<compile_context>
chip_gen: v7x
topology: tpu7x:2x2x1
jax: 0.10.0
libtpu: 0.0.40
codegen_flags: <defaults>
</compile_context>

<pallas_src>
import jax
import jax.numpy as jnp
from jax.experimental import pallas as pl
from jax.experimental.pallas import tpu as pltpu

D_IN = 512 + 128   # 640
D_HID = 256
D_OUT = 2


def _gating_kernel(x_ref, w1_ref, b1_ref, w2_ref, b2_ref, out_ref):
    """Fused Linear -> ReLU -> Linear -> Softmax over one batch tile."""
    x = x_ref[...]                                                    # (TB, 640)

    # Linear 1 + ReLU (f32 MXU accumulation)
    h = jnp.dot(x, w1_ref[...], preferred_element_type=jnp.float32) + b1_ref[...]
    h = jnp.maximum(h, 0.0)                                           # (TB, 256)

    # Linear 2
    logits = jnp.dot(h, w2_ref[...], preferred_element_type=jnp.float32) + b2_ref[...]

    # Softmax along dim=1 (numerically stable)
    m = jnp.max(logits, axis=-1, keepdims=True)
    e = jnp.exp(logits - m)
    out_ref[...] = (e / jnp.sum(e, axis=-1, keepdims=True)).astype(out_ref.dtype)


def gating_function(x, params, *, batch_block=256):
    """x: (B, 640) float32. Returns (B, 2) softmax probabilities."""
    B = x.shape[0]
    w1, b1, w2, b2 = params["w1"], params["b1"], params["w2"], params["b2"]

    # Single block for small batches; tile large batches (weights stay resident).
    tb = B if B <= batch_block else batch_block
    grid = (pl.cdiv(B, tb),)

    return pl.pallas_call(
        _gating_kernel,
        out_shape=jax.ShapeDtypeStruct((B, D_OUT), jnp.float32),
        grid_spec=pltpu.PrefetchScalarGridSpec(
            num_scalar_prefetch=0,
            grid=grid,
            in_specs=[
                # batch tile of the input
                pl.BlockSpec((tb, D_IN), lambda i: (i, 0)),
                # weights / biases: full arrays, constant block index -> VMEM-resident
                pl.BlockSpec((D_IN, D_HID), lambda i: (0, 0)),
                pl.BlockSpec((1, D_HID), lambda i: (0, 0)),
                pl.BlockSpec((D_HID, D_OUT), lambda i: (0, 0)),
                pl.BlockSpec((1, D_OUT), lambda i: (0, 0)),
            ],
            out_specs=pl.BlockSpec((tb, D_OUT), lambda i: (i, 0)),
        ),
        compiler_params=pltpu.CompilerParams(
            # batch tiles are independent -> shard across v7x's 2 TensorCores
            dimension_semantics=("parallel",),
        ),
    )(x, w1, b1, w2, b2)


def init_params(key):
    """Deterministic synthetic parameters, PyTorch-default-style init."""
    k1, k2, k3, k4 = jax.random.split(key, 4)
    s1 = 1.0 / jnp.sqrt(D_IN)
    s2 = 1.0 / jnp.sqrt(D_HID)
    return {
        "w1": jax.random.uniform(k1, (D_IN, D_HID), jnp.float32, -s1, s1),
        "b1": jax.random.uniform(k2, (1, D_HID), jnp.float32, -s1, s1),
        "w2": jax.random.uniform(k3, (D_HID, D_OUT), jnp.float32, -s2, s2),
        "b2": jax.random.uniform(k4, (1, D_OUT), jnp.float32, -s2, s2),
    }


def reference(x, params):
    """Pure-JAX reference matching the PyTorch forward."""
    h = jnp.maximum(x @ params["w1"] + params["b1"], 0.0)
    logits = h @ params["w2"] + params["b2"]
    return jax.nn.softmax(logits, axis=1)


if __name__ == "__main__":
    key = jax.random.PRNGKey(0)
    k_x, k_p = jax.random.split(key)

    B = 2
    x = jax.random.normal(k_x, (B, D_IN), jnp.float32)
    params = init_params(k_p)

    out = gating_function(x, params)
    out = jax.block_until_ready(out)

    ref = reference(x, params)
    assert out.shape == (B, D_OUT), out.shape
    assert jnp.allclose(out, ref, atol=1e-5, rtol=1e-5), float(jnp.max(jnp.abs(out - ref)))
    # softmax rows sum to 1
    assert jnp.allclose(jnp.sum(out, axis=1), 1.0, atol=1e-5)

    print("KERNEL_OK")
</pallas_src>

<mosaic_0001>
module attributes {stable_mosaic.version = 11 : i64} {
  func.func @_gating_kernel(%arg0: i32, %arg1: memref<2x640xf32, #tpu.memory_space<vmem>>, %arg2: memref<640x256xf32, #tpu.memory_space<vmem>>, %arg3: memref<1x256xf32, #tpu.memory_space<vmem>>, %arg4: memref<256x2xf32, #tpu.memory_space<vmem>>, %arg5: memref<1x2xf32, #tpu.memory_space<vmem>>, %arg6: memref<2x2xf32, #tpu.memory_space<vmem>>) attributes {dimension_semantics = [#tpu.dimension_semantics<parallel>], iteration_bounds = array<i64: 1>, scalar_prefetch = 0 : i64, scratch_operands = 0 : i64, tpu.core_type = #tpu.core_type<tc>, window_params = [{transform_indices = @transform_0, window_bounds = array<i64: 2, 640>}, {pipeline_mode = #tpu.pipeline_mode<synchronous>, transform_indices = @transform_1, window_bounds = array<i64: 640, 256>}, {pipeline_mode = #tpu.pipeline_mode<synchronous>, transform_indices = @transform_2, window_bounds = array<i64: 1, 256>}, {pipeline_mode = #tpu.pipeline_mode<synchronous>, transform_indices = @transform_3, window_bounds = array<i64: 256, 2>}, {pipeline_mode = #tpu.pipeline_mode<synchronous>, transform_indices = @transform_4, window_bounds = array<i64: 1, 2>}, {transform_indices = @transform_5, window_bounds = array<i64: 2, 2>}]} {
    %c0 = arith.constant 0 : index
    %c0_0 = arith.constant 0 : index
    %0 = vector.load %arg1[%c0, %c0_0] : memref<2x640xf32, #tpu.memory_space<vmem>>, vector<2x640xf32>
    %c0_1 = arith.constant 0 : index
    %c0_2 = arith.constant 0 : index
    %1 = vector.load %arg2[%c0_1, %c0_2] : memref<640x256xf32, #tpu.memory_space<vmem>>, vector<640x256xf32>
    %cst = arith.constant dense<0.000000e+00> : vector<2x256xf32>
    %2 = tpu.matmul %0, %1, %cst {dimension_numbers = #tpu.dot_dimension_numbers<[1], [0], [0], [1], [0, 0, 1, 1], [], []>} : vector<2x640xf32>, vector<640x256xf32>, vector<2x256xf32> -> vector<2x256xf32>
    %c0_3 = arith.constant 0 : index
    %c0_4 = arith.constant 0 : index
    %3 = vector.load %arg3[%c0_3, %c0_4] : memref<1x256xf32, #tpu.memory_space<vmem>>, vector<1x256xf32>
    %4 = vector.broadcast %3 : vector<1x256xf32> to vector<2x256xf32>
    %5 = arith.addf %2, %4 : vector<2x256xf32>
    %cst_5 = arith.constant 0.000000e+00 : f32
    %6 = vector.broadcast %cst_5 : f32 to vector<2x256xf32>
    %7 = arith.maximumf %5, %6 : vector<2x256xf32>
    %c0_6 = arith.constant 0 : index
    %c0_7 = arith.constant 0 : index
    %8 = vector.load %arg4[%c0_6, %c0_7] : memref<256x2xf32, #tpu.memory_space<vmem>>, vector<256x2xf32>
    %cst_8 = arith.constant dense<0.000000e+00> : vector<2x2xf32>
    %9 = tpu.matmul %7, %8, %cst_8 {dimension_numbers = #tpu.dot_dimension_numbers<[1], [0], [0], [1], [0, 0, 1, 1], [], []>} : vector<2x256xf32>, vector<256x2xf32>, vector<2x2xf32> -> vector<2x2xf32>
    %c0_9 = arith.constant 0 : index
    %c0_10 = arith.constant 0 : index
    %10 = vector.load %arg5[%c0_9, %c0_10] : memref<1x2xf32, #tpu.memory_space<vmem>>, vector<1x2xf32>
    %11 = vector.broadcast %10 : vector<1x2xf32> to vector<2x2xf32>
    %12 = arith.addf %9, %11 : vector<2x2xf32>
    %cst_11 = arith.constant dense<0xFF800000> : vector<2xf32>
    %13 = vector.multi_reduction <maximumf>, %12, %cst_11 [1] : vector<2x2xf32> to vector<2xf32>
    %14 = vector.shape_cast %13 : vector<2xf32> to vector<2x1xf32>
    %15 = vector.broadcast %14 : vector<2x1xf32> to vector<2x2xf32>
    %16 = arith.subf %12, %15 : vector<2x2xf32>
    %17 = math.exp %16 : vector<2x2xf32>
    %cst_12 = arith.constant dense<0.000000e+00> : vector<2xf32>
    %18 = vector.multi_reduction <add>, %17, %cst_12 [1] : vector<2x2xf32> to vector<2xf32>
    %19 = vector.shape_cast %18 : vector<2xf32> to vector<2x1xf32>
    %20 = vector.broadcast %19 : vector<2x1xf32> to vector<2x2xf32>
    %21 = arith.divf %17, %20 : vector<2x2xf32>
    %c0_13 = arith.constant 0 : index
    %c0_14 = arith.constant 0 : index
    %22 = vector.load %arg6[%c0_13, %c0_14] : memref<2x2xf32, #tpu.memory_space<vmem>>, vector<2x2xf32>
    tpu.vector_store %arg6[%c0_13, %c0_14], %21 {strides = array<i32>} : memref<2x2xf32, #tpu.memory_space<vmem>>, vector<2x2xf32>,
    return
  }
  func.func @transform_0(%arg0: i32) -> (i32, i32) {
    %c0_i32 = arith.constant 0 : i32
    %c0_i32_0 = arith.constant 0 : i32
    return %arg0, %c0_i32 : i32, i32
  }
  func.func @transform_1(%arg0: i32) -> (i32, i32) {
    %c0_i32 = arith.constant 0 : i32
    %c0_i32_0 = arith.constant 0 : i32
    %c0_i32_1 = arith.constant 0 : i32
    return %c0_i32, %c0_i32_0 : i32, i32
  }
  func.func @transform_2(%arg0: i32) -> (i32, i32) {
    %c0_i32 = arith.constant 0 : i32
    %c0_i32_0 = arith.constant 0 : i32
    %c0_i32_1 = arith.constant 0 : i32
    return %c0_i32, %c0_i32_0 : i32, i32
  }
  func.func @transform_3(%arg0: i32) -> (i32, i32) {
    %c0_i32 = arith.constant 0 : i32
    %c0_i32_0 = arith.constant 0 : i32
    %c0_i32_1 = arith.constant 0 : i32
    return %c0_i32, %c0_i32_0 : i32, i32
  }
  func.func @transform_4(%arg0: i32) -> (i32, i32) {
    %c0_i32 = arith.constant 0 : i32
    %c0_i32_0 = arith.constant 0 : i32
    %c0_i32_1 = arith.constant 0 : i32
    return %c0_i32, %c0_i32_0 : i32, i32
  }
  func.func @transform_5(%arg0: i32) -> (i32, i32) {
    %c0_i32 = arith.constant 0 : i32
    %c0_i32_0 = arith.constant 0 : i32
    return %arg0, %c0_i32 : i32, i32
  }
}

</mosaic_0001>

<llo_original>
// kernel: tpu_custom_call.1
$region0: #{tpu_custom_call.1}
  #allocation0 [shape = 'u32[]', space=smem, size = 0x4, offset = 0x4, fixed_abs, tag = 'smem constant byte address 0x4 - core index']
  #allocation1 [shape = 'u32[144,128]{1,0:T(1,128)}', space=vmem, size = 0x12000, scoped, tag = 'internal scratch']
  %s0 = inlined_call_operand.vmem [shape: f32[2,640], index: 0, kind: input, shape index: {}]
  %s1 = inlined_call_operand.hbm [shape: f32[640,256], index: 1, kind: input, shape index: {}]
  %s2 = inlined_call_operand.vmem [shape: f32[1,256], index: 2, kind: input, shape index: {}]
  %s3 = inlined_call_operand.vmem [shape: f32[256,2], index: 3, kind: input, shape index: {}]
  %s4 = inlined_call_operand.vmem [shape: f32[1,2], index: 4, kind: input, shape index: {}]
  %s5 = inlined_call_operand.hbm [shape: f32[2,2], index: 5, kind: output, shape index: {}]
  %s6 = sld [smem:[#allocation0]]
  $region34: #{tpu_custom_call.1} parent=0
    _
  %s8 = ssub.s32 1, %s6
  %s9 = scalar_select 0, %s8, %s6
  $region1: #{tpu_custom_call.1} parent=0
    #allocation2 [shape = 'u8[655360]{0}', space=vmem, size = 0xa0000, scoped, tag = 'input window, operand 1, single buffered']
    #allocation3 [shape = 's32[1]{0}', space=sflag, size = 0x4, scoped, tag = 'scoped memory for tpu_custom_call.1']
    #allocation4 [shape = 's32[1]{0}', space=sflag, size = 0x4, scoped, tag = 'scoped memory for tpu_custom_call.1']
    #allocation5 [shape = 'u8[1024]{0}', space=vmem, size = 0x400, scoped, tag = 'output window, operand 0, single buffered']
    %10 = vsyncpa [#allocation3], 0
    %11 = vsyncpa [#allocation4], 0
    // Predicated region
    $region2: #{tpu_custom_call.1} parent=1 // pred_check
      _
    $region3: #{tpu_custom_call.1} parent=1 // pred_check_branch
      %13 = sbr.rel (0) target = $region5
    $region4: #{tpu_custom_call.1} parent=1 // pred_region
      _
    $region5: #{tpu_custom_call.1} parent=1 // pred_fallthru
      _
    // Predicated region
    $region6: #{tpu_custom_call.1} parent=1 // pred_check
      _
    $region7: #{tpu_custom_call.1} parent=1 // pred_check_branch
      %15 = sbr.rel (0) target = $region9
    $region8: #{tpu_custom_call.1} parent=1 // pred_region
      %s17 = ssub.s32 20480, 20480
      %18 = vsyncadd [#allocation3], %s17
      %s19 = sshll.u32 [#allocation2], 4
      %s20 = int_to_ptr.vmem [resolvable:$true] %s19
      %25 = dma.hbm_to_vmem [thread:$0]  %s1, 20480, %s20, [#allocation3], 256, 256, 16
    $region9: #{tpu_custom_call.1} parent=1 // pred_fallthru
      _
    // Predicated region
    $region10: #{tpu_custom_call.1} parent=1 // pred_check
      _
    $region11: #{tpu_custom_call.1} parent=1 // pred_check_branch
      %27 = sbr.rel (0) target = $region13
    $region12: #{tpu_custom_call.1} parent=1 // pred_region
      _
    $region13: #{tpu_custom_call.1} parent=1 // pred_fallthru
      _
    // Predicated region
    $region14: #{tpu_custom_call.1} parent=1 // pred_check
      _
    $region15: #{tpu_custom_call.1} parent=1 // pred_check_branch
      %29 = sbr.rel (0) target = $region17
    $region16: #{tpu_custom_call.1} parent=1 // pred_region
      _
    $region17: #{tpu_custom_call.1} parent=1 // pred_fallthru
      _
    // Predicated region
    $region18: #{tpu_custom_call.1} parent=1 // pred_check
      _
    $region19: #{tpu_custom_call.1} parent=1 // pred_check_branch
      %31 = sbr.rel (0) target = $region21
    $region20: #{tpu_custom_call.1} parent=1 // pred_region
      _
    $region21: #{tpu_custom_call.1} parent=1 // pred_fallthru
      _
    // Predicated region
    $region22: #{tpu_custom_call.1} parent=1 // pred_check
      _
    $region23: #{tpu_custom_call.1} parent=1 // pred_check_branch
      %33 = sbr.rel (0) target = $region25
    $region24: #{tpu_custom_call.1} parent=1 // pred_region
      %34 = dma.done [#allocation3], 20480
    $region25: #{tpu_custom_call.1} parent=1 // pred_fallthru
      _
    %v35 = vld [vmem:[%s0] sm:$0xff]
    %v36 = vld [vmem:[%s0 + $0x8] sm:$0x3]
    %v37 = vld [vmem:[#allocation2] sm:$0xff]
    %v38 = vld [vmem:[#allocation2 + $0x8] sm:$0xff]
    %v39 = vld [vmem:[#allocation2 + $0x10] sm:$0xff]
    %v40 = vld [vmem:[#allocation2 + $0x18] sm:$0xff]
    %v41 = vld [vmem:[#allocation2 + $0x20] sm:$0xff]
    %v42 = vld [vmem:[#allocation2 + $0x28] sm:$0xff]
    %v43 = vld [vmem:[#allocation2 + $0x30] sm:$0xff]
    %v44 = vld [vmem:[#allocation2 + $0x38] sm:$0xff]
    %v45 = vld [vmem:[#allocation2 + $0x40] sm:$0xff]
    %v46 = vld [vmem:[#allocation2 + $0x48] sm:$0xff]
    %v47 = vld [vmem:[#allocation2 + $0x50] sm:$0xff]
    %v48 = vld [vmem:[#allocation2 + $0x58] sm:$0xff]
    %v49 = vld [vmem:[#allocation2 + $0x60] sm:$0xff]
    %v50 = vld [vmem:[#allocation2 + $0x68] sm:$0xff]
    %v51 = vld [vmem:[#allocation2 + $0x70] sm:$0xff]
    %v52 = vld [vmem:[#allocation2 + $0x78] sm:$0xff]
    %v53 = vld [vmem:[#allocation2 + $0x80] sm:$0xff]
    %v54 = vld [vmem:[#allocation2 + $0x88] sm:$0xff]
    %v55 = vld [vmem:[#allocation2 + $0x90] sm:$0xff]
    %v56 = vld [vmem:[#allocation2 + $0x98] sm:$0xff]
    %v57 = vld [vmem:[#allocation2 + $0xa0] sm:$0xff]
    %v58 = vld [vmem:[#allocation2 + $0xa8] sm:$0xff]
    %v59 = vld [vmem:[#allocation2 + $0xb0] sm:$0xff]
    %v60 = vld [vmem:[#allocation2 + $0xb8] sm:$0xff]
    %v61 = vld [vmem:[#allocation2 + $0xc0] sm:$0xff]
    %v62 = vld [vmem:[#allocation2 + $0xc8] sm:$0xff]
    %v63 = vld [vmem:[#allocation2 + $0xd0] sm:$0xff]
    %v64 = vld [vmem:[#allocation2 + $0xd8] sm:$0xff]
    %v65 = vld [vmem:[#allocation2 + $0xe0] sm:$0xff]
    %v66 = vld [vmem:[#allocation2 + $0xe8] sm:$0xff]
    %v67 = vld [vmem:[#allocation2 + $0xf0] sm:$0xff]
    %v68 = vld [vmem:[#allocation2 + $0xf8] sm:$0xff]
    %v69 = vld [vmem:[#allocation2 + $0x100] sm:$0xff]
    %v70 = vld [vmem:[#allocation2 + $0x108] sm:$0xff]
    %v71 = vld [vmem:[#allocation2 + $0x110] sm:$0xff]
    %v72 = vld [vmem:[#allocation2 + $0x118] sm:$0xff]
    %v73 = vld [vmem:[#allocation2 + $0x120] sm:$0xff]
    %v74 = vld [vmem:[#allocation2 + $0x128] sm:$0xff]
    %v75 = vld [vmem:[#allocation2 + $0x130] sm:$0xff]
    %v76 = vld [vmem:[#allocation2 + $0x138] sm:$0xff]
    %v77 = vld [vmem:[#allocation2 + $0x140] sm:$0xff]
    %v78 = vld [vmem:[#allocation2 + $0x148] sm:$0xff]
    %v79 = vld [vmem:[#allocation2 + $0x150] sm:$0xff]
    %v80 = vld [vmem:[#allocation2 + $0x158] sm:$0xff]
    %v81 = vld [vmem:[#allocation2 + $0x160] sm:$0xff]
    %v82 = vld [vmem:[#allocation2 + $0x168] sm:$0xff]
    %v83 = vld [vmem:[#allocation2 + $0x170] sm:$0xff]
    %v84 = vld [vmem:[#allocation2 + $0x178] sm:$0xff]
    %v85 = vld [vmem:[#allocation2 + $0x180] sm:$0xff]
    %v86 = vld [vmem:[#allocation2 + $0x188] sm:$0xff]
    %v87 = vld [vmem:[#allocation2 + $0x190] sm:$0xff]
    %v88 = vld [vmem:[#allocation2 + $0x198] sm:$0xff]
    %v89 = vld [vmem:[#allocation2 + $0x1a0] sm:$0xff]
    %v90 = vld [vmem:[#allocation2 + $0x1a8] sm:$0xff]
    %v91 = vld [vmem:[#allocation2 + $0x1b0] sm:$0xff]
    %v92 = vld [vmem:[#allocation2 + $0x1b8] sm:$0xff]
    %v93 = vld [vmem:[#allocation2 + $0x1c0] sm:$0xff]
    %v94 = vld [vmem:[#allocation2 + $0x1c8] sm:$0xff]
    %v95 = vld [vmem:[#allocation2 + $0x1d0] sm:$0xff]
    %v96 = vld [vmem:[#allocation2 + $0x1d8] sm:$0xff]
    %v97 = vld [vmem:[#allocation2 + $0x1e0] sm:$0xff]
    %v98 = vld [vmem:[#allocation2 + $0x1e8] sm:$0xff]
    %v99 = vld [vmem:[#allocation2 + $0x1f0] sm:$0xff]
    %v100 = vld [vmem:[#allocation2 + $0x1f8] sm:$0xff]
    %v101 = vld [vmem:[#allocation2 + $0x200] sm:$0xff]
    %v102 = vld [vmem:[#allocation2 + $0x208] sm:$0xff]
    %v103 = vld [vmem:[#allocation2 + $0x210] sm:$0xff]
    %v104 = vld [vmem:[#allocation2 + $0x218] sm:$0xff]
    %v105 = vld [vmem:[#allocation2 + $0x220] sm:$0xff]
    %v106 = vld [vmem:[#allocation2 + $0x228] sm:$0xff]
    %v107 = vld [vmem:[#allocation2 + $0x230] sm:$0xff]
    %v108 = vld [vmem:[#allocation2 + $0x238] sm:$0xff]
    %v109 = vld [vmem:[#allocation2 + $0x240] sm:$0xff]
    %v110 = vld [vmem:[#allocation2 + $0x248] sm:$0xff]
    %v111 = vld [vmem:[#allocation2 + $0x250] sm:$0xff]
    %v112 = vld [vmem:[#allocation2 + $0x258] sm:$0xff]
    %v113 = vld [vmem:[#allocation2 + $0x260] sm:$0xff]
    %v114 = vld [vmem:[#allocation2 + $0x268] sm:$0xff]
    %v115 = vld [vmem:[#allocation2 + $0x270] sm:$0xff]
    %v116 = vld [vmem:[#allocation2 + $0x278] sm:$0xff]
    %v117 = vld [vmem:[#allocation2 + $0x280] sm:$0xff]
    %v118 = vld [vmem:[#allocation2 + $0x288] sm:$0xff]
    %v119 = vld [vmem:[#allocation2 + $0x290] sm:$0xff]
    %v120 = vld [vmem:[#allocation2 + $0x298] sm:$0xff]
    %v121 = vld [vmem:[#allocation2 + $0x2a0] sm:$0xff]
    %v122 = vld [vmem:[#allocation2 + $0x2a8] sm:$0xff]
    %v123 = vld [vmem:[#allocation2 + $0x2b0] sm:$0xff]
    %v124 = vld [vmem:[#allocation2 + $0x2b8] sm:$0xff]
    %v125 = vld [vmem:[#allocation2 + $0x2c0] sm:$0xff]
    %v126 = vld [vmem:[#allocation2 + $0x2c8] sm:$0xff]
    %v127 = vld [vmem:[#allocation2 + $0x2d0] sm:$0xff]
    %v128 = vld [vmem:[#allocation2 + $0x2d8] sm:$0xff]
    %v129 = vld [vmem:[#allocation2 + $0x2e0] sm:$0xff]
    %v130 = vld [vmem:[#allocation2 + $0x2e8] sm:$0xff]
    %v131 = vld [vmem:[#allocation2 + $0x2f0] sm:$0xff]
    %v132 = vld [vmem:[#allocation2 + $0x2f8] sm:$0xff]
    %v133 = vld [vmem:[#allocation2 + $0x300] sm:$0xff]
    %v134 = vld [vmem:[#allocation2 + $0x308] sm:$0xff]
    %v135 = vld [vmem:[#allocation2 + $0x310] sm:$0xff]
    %v136 = vld [vmem:[#allocation2 + $0x318] sm:$0xff]
    %v137 = vld [vmem:[#allocation2 + $0x320] sm:$0xff]
    %v138 = vld [vmem:[#allocation2 + $0x328] sm:$0xff]
    %v139 = vld [vmem:[#allocation2 + $0x330] sm:$0xff]
    %v140 = vld [vmem:[#allocation2 + $0x338] sm:$0xff]
    %v141 = vld [vmem:[#allocation2 + $0x340] sm:$0xff]
    %v142 = vld [vmem:[#allocation2 + $0x348] sm:$0xff]
    %v143 = vld [vmem:[#allocation2 + $0x350] sm:$0xff]
    %v144 = vld [vmem:[#allocation2 + $0x358] sm:$0xff]
    %v145 = vld [vmem:[#allocation2 + $0x360] sm:$0xff]
    %v146 = vld [vmem:[#allocation2 + $0x368] sm:$0xff]
    %v147 = vld [vmem:[#allocation2 + $0x370] sm:$0xff]
    %v148 = vld [vmem:[#allocation2 + $0x378] sm:$0xff]
    %v149 = vld [vmem:[#allocation2 + $0x380] sm:$0xff]
    %v150 = vld [vmem:[#allocation2 + $0x388] sm:$0xff]
    %v151 = vld [vmem:[#allocation2 + $0x390] sm:$0xff]
    %v152 = vld [vmem:[#allocation2 + $0x398] sm:$0xff]
    %v153 = vld [vmem:[#allocation2 + $0x3a0] sm:$0xff]
    %v154 = vld [vmem:[#allocation2 + $0x3a8] sm:$0xff]
    %v155 = vld [vmem:[#allocation2 + $0x3b0] sm:$0xff]
    %v156 = vld [vmem:[#allocation2 + $0x3b8] sm:$0xff]
    %v157 = vld [vmem:[#allocation2 + $0x3c0] sm:$0xff]
    %v158 = vld [vmem:[#allocation2 + $0x3c8] sm:$0xff]
    %v159 = vld [vmem:[#allocation2 + $0x3d0] sm:$0xff]
    %v160 = vld [vmem:[#allocation2 + $0x3d8] sm:$0xff]
    %v161 = vld [vmem:[#allocation2 + $0x3e0] sm:$0xff]
    %v162 = vld [vmem:[#allocation2 + $0x3e8] sm:$0xff]
    %v163 = vld [vmem:[#allocation2 + $0x3f0] sm:$0xff]
    %v164 = vld [vmem:[#allocation2 + $0x3f8] sm:$0xff]
    %v165 = vld [vmem:[#allocation2 + $0x400] sm:$0xff]
    %v166 = vld [vmem:[#allocation2 + $0x408] sm:$0xff]
    %v167 = vld [vmem:[#allocation2 + $0x410] sm:$0xff]
    %v168 = vld [vmem:[#allocation2 + $0x418] sm:$0xff]
    %v169 = vld [vmem:[#allocation2 + $0x420] sm:$0xff]
    %v170 = vld [vmem:[#allocation2 + $0x428] sm:$0xff]
    %v171 = vld [vmem:[#allocation2 + $0x430] sm:$0xff]
    %v172 = vld [vmem:[#allocation2 + $0x438] sm:$0xff]
    %v173 = vld [vmem:[#allocation2 + $0x440] sm:$0xff]
    %v174 = vld [vmem:[#allocation2 + $0x448] sm:$0xff]
    %v175 = vld [vmem:[#allocation2 + $0x450] sm:$0xff]
    %v176 = vld [vmem:[#allocation2 + $0x458] sm:$0xff]
    %v177 = vld [vmem:[#allocation2 + $0x460] sm:$0xff]
    %v178 = vld [vmem:[#allocation2 + $0x468] sm:$0xff]
    %v179 = vld [vmem:[#allocation2 + $0x470] sm:$0xff]
    %v180 = vld [vmem:[#allocation2 + $0x478] sm:$0xff]
    %v181 = vld [vmem:[#allocation2 + $0x480] sm:$0xff]
    %v182 = vld [vmem:[#allocation2 + $0x488] sm:$0xff]
    %v183 = vld [vmem:[#allocation2 + $0x490] sm:$0xff]
    %v184 = vld [vmem:[#allocation2 + $0x498] sm:$0xff]
    %v185 = vld [vmem:[#allocation2 + $0x4a0] sm:$0xff]
    %v186 = vld [vmem:[#allocation2 + $0x4a8] sm:$0xff]
    %v187 = vld [vmem:[#allocation2 + $0x4b0] sm:$0xff]
    %v188 = vld [vmem:[#allocation2 + $0x4b8] sm:$0xff]
    %v189 = vld [vmem:[#allocation2 + $0x4c0] sm:$0xff]
    %v190 = vld [vmem:[#allocation2 + $0x4c8] sm:$0xff]
    %v191 = vld [vmem:[#allocation2 + $0x4d0] sm:$0xff]
    %v192 = vld [vmem:[#allocation2 + $0x4d8] sm:$0xff]
    %v193 = vld [vmem:[#allocation2 + $0x4e0] sm:$0xff]
    %v194 = vld [vmem:[#allocation2 + $0x4e8] sm:$0xff]
    %v195 = vld [vmem:[#allocation2 + $0x4f0] sm:$0xff]
    %v196 = vld [vmem:[#allocation2 + $0x4f8] sm:$0xff]
    %v197 = vld [vmem:[%s2] sm:$0x3]
    %v199 = vlaneseq
    %v200 = vshrl.u32 %v199, 7
    %v201 = vsub.s32 0, %v200
    %v202 = vrot.slane %v197, %v201
    %v203 = vlaneseq
    %v204 = vshrl.u32 %v203, 7
    %v205 = vsub.s32 1, %v204
    %v206 = vrot.slane %v197, %v205
    %v211 = vcombine.high %v35, %v35
    %v213 = vunpack.c.l.s4 1983009808
    %v214 = vunpack.c.0.s8 %v213
    %v215 = vlaneseq
    %v216 = vshrl.u32 %v215, 7
    %v217 = vsub.s32 %v214, %v216
    %v218 = vrot.slane %v35, %v217
    %v220 = vunpack.c.l.s4 1983009808
    %v221 = vunpack.c.0.s8 %v220
    %v222 = vlaneseq
    %v223 = vshrl.u32 %v222, 7
    %v224 = vsub.s32 %v221, %v223
    %v225 = vrot.slane %v211, %v224
    %v226 = vcombine.high %v218, %v218
    %v227 = vcombine.high %v225, %v225
    %v229 = vunpack.c.l.s4 1983009808
    %v230 = vunpack.c.0.s8 %v229
    %v231 = vlaneseq
    %v232 = vshrl.u32 %v231, 7
    %v233 = vsub.s32 %v230, %v232
    %v234 = vrot.slane %v36, %v233
    %240 = vmatprep.subr.mxu0 %v38
    %241 = vmatpush1.msra.mxu0 %v37
    %242 = vmatprep.subr.mxu0 %v40
    %243 = vmatpush1.msra.mxu0 %v39
    %244 = vmatprep.subr.mxu0 %v42
    %245 = vmatpush1.msra.mxu0 %v41
    %246 = vmatprep.subr.mxu0 %v44
    %247 = vmatpush1.msra.mxu0 %v43
    %248 = vmatprep.subr.mxu0 %v46
    %249 = vmatpush1.msra.mxu0 %v45
    %250 = vmatprep.subr.mxu0 %v48
    %251 = vmatpush1.msra.mxu0 %v47
    %252 = vmatprep.subr.mxu0 %v50
    %253 = vmatpush1.msra.mxu0 %v49
    %254 = vmatprep.subr.mxu0 %v52
    %255 = vmatpush1.msra.mxu0 %v51
    %256 = vmatprep.subr.mxu0 %v54
    %257 = vmatpush1.msra.mxu0 %v53
    %258 = vmatprep.subr.mxu0 %v56
    %259 = vmatpush1.msra.mxu0 %v55
    %260 = vmatprep.subr.mxu0 %v58
    %261 = vmatpush1.msra.mxu0 %v57
    %262 = vmatprep.subr.mxu0 %v60
    %263 = vmatpush1.msra.mxu0 %v59
    %264 = vmatprep.subr.mxu0 %v62
    %265 = vmatpush1.msra.mxu0 %v61
    %266 = vmatprep.subr.mxu0 %v64
    %267 = vmatpush1.msra.mxu0 %v63
    %268 = vmatprep.subr.mxu0 %v66
    %269 = vmatpush1.msra.mxu0 %v65
    %270 = vmatprep.subr.mxu0 %v68
    %271 = vmatpush1.msra.mxu0 %v67
    %272 = vmatprep.subr.mxu0 %v70
    %273 = vmatpush1.msra.mxu0 %v69
    %274 = vmatprep.subr.mxu0 %v72
    %275 = vmatpush1.msra.mxu0 %v71
    %276 = vmatprep.subr.mxu0 %v74
    %277 = vmatpush1.msra.mxu0 %v73
    %278 = vmatprep.subr.mxu0 %v76
    %279 = vmatpush1.msra.mxu0 %v75
    %280 = vmatprep.subr.mxu0 %v78
    %281 = vmatpush1.msra.mxu0 %v77
    %282 = vmatprep.subr.mxu0 %v80
    %283 = vmatpush1.msra.mxu0 %v79
    %284 = vmatprep.subr.mxu0 %v82
    %285 = vmatpush1.msra.mxu0 %v81
    %286 = vmatprep.subr.mxu0 %v84
    %287 = vmatpush1.msra.mxu0 %v83
    %288 = vmatprep.subr.mxu0 %v86
    %289 = vmatpush1.msra.mxu0 %v85
    %290 = vmatprep.subr.mxu0 %v88
    %291 = vmatpush1.msra.mxu0 %v87
    %292 = vmatprep.subr.mxu0 %v90
    %293 = vmatpush1.msra.mxu0 %v89
    %294 = vmatprep.subr.mxu0 %v92
    %295 = vmatpush1.msra.mxu0 %v91
    %296 = vmatprep.subr.mxu0 %v94
    %297 = vmatpush1.msra.mxu0 %v93
    %298 = vmatprep.subr.mxu0 %v96
    %299 = vmatpush1.msra.mxu0 %v95
    %300 = vmatprep.subr.mxu0 %v98
    %301 = vmatpush1.msra.mxu0 %v97
    %302 = vmatprep.subr.mxu0 %v100
    %303 = vmatpush1.msra.mxu0 %v99
    %304 = vmatprep.mubr.f32.mxu0 %v226
    %305 = vmatmul.mubr.f32.gmra.mrb[0].mxu0 %v218
    %v306 = vpop.f32.mrb[0].mxu0
    %v307 = vadd.f32 %v202, %v306
    %v308 = vpop.f32.mrb[0].mxu0
    %v309 = vadd.f32 %v206, %v308
    %310 = vdwg.mxu0
    %311 = vmatprep.subr.mxu0 %v102
    %312 = vmatpush1.msra.mxu0 %v101
    %313 = vmatprep.subr.mxu0 %v104
    %314 = vmatpush1.msra.mxu0 %v103
    %315 = vmatprep.subr.mxu0 %v106
    %316 = vmatpush1.msra.mxu0 %v105
    %317 = vmatprep.subr.mxu0 %v108
    %318 = vmatpush1.msra.mxu0 %v107
    %319 = vmatprep.subr.mxu0 %v110
    %320 = vmatpush1.msra.mxu0 %v109
    %321 = vmatprep.subr.mxu0 %v112
    %322 = vmatpush1.msra.mxu0 %v111
    %323 = vmatprep.subr.mxu0 %v114
    %324 = vmatpush1.msra.mxu0 %v113
    %325 = vmatprep.subr.mxu0 %v116
    %326 = vmatpush1.msra.mxu0 %v115
    %327 = vmatprep.subr.mxu0 %v118
    %328 = vmatpush1.msra.mxu0 %v117
    %329 = vmatprep.subr.mxu0 %v120
    %330 = vmatpush1.msra.mxu0 %v119
    %331 = vmatprep.subr.mxu0 %v122
    %332 = vmatpush1.msra.mxu0 %v121
    %333 = vmatprep.subr.mxu0 %v124
    %334 = vmatpush1.msra.mxu0 %v123
    %335 = vmatprep.subr.mxu0 %v126
    %336 = vmatpush1.msra.mxu0 %v125
    %337 = vmatprep.subr.mxu0 %v128
    %338 = vmatpush1.msra.mxu0 %v127
    %339 = vmatprep.subr.mxu0 %v130
    %340 = vmatpush1.msra.mxu0 %v129
    %341 = vmatprep.subr.mxu0 %v132
    %342 = vmatpush1.msra.mxu0 %v131
    %343 = vmatprep.subr.mxu0 %v134
    %344 = vmatpush1.msra.mxu0 %v133
    %345 = vmatprep.subr.mxu0 %v136
    %346 = vmatpush1.msra.mxu0 %v135
    %347 = vmatprep.subr.mxu0 %v138
    %348 = vmatpush1.msra.mxu0 %v137
    %349 = vmatprep.subr.mxu0 %v140
    %350 = vmatpush1.msra.mxu0 %v139
    %351 = vmatprep.subr.mxu0 %v142
    %352 = vmatpush1.msra.mxu0 %v141
    %353 = vmatprep.subr.mxu0 %v144
    %354 = vmatpush1.msra.mxu0 %v143
    %355 = vmatprep.subr.mxu0 %v146
    %356 = vmatpush1.msra.mxu0 %v145
    %357 = vmatprep.subr.mxu0 %v148
    %358 = vmatpush1.msra.mxu0 %v147
    %359 = vmatprep.subr.mxu0 %v150
    %360 = vmatpush1.msra.mxu0 %v149
    %361 = vmatprep.subr.mxu0 %v152
    %362 = vmatpush1.msra.mxu0 %v151
    %363 = vmatprep.subr.mxu0 %v154
    %364 = vmatpush1.msra.mxu0 %v153
    %365 = vmatprep.subr.mxu0 %v156
    %366 = vmatpush1.msra.mxu0 %v155
    %367 = vmatprep.subr.mxu0 %v158
    %368 = vmatpush1.msra.mxu0 %v157
    %369 = vmatprep.subr.mxu0 %v160
    %370 = vmatpush1.msra.mxu0 %v159
    %371 = vmatprep.subr.mxu0 %v162
    %372 = vmatpush1.msra.mxu0 %v161
    %373 = vmatprep.subr.mxu0 %v164
    %374 = vmatpush1.msra.mxu0 %v163
    %375 = vmatprep.mubr.f32.mxu0 %v227
    %376 = vmatmul.mubr.f32.gmra.mrb[0].mxu0 %v225
    %v377 = vpop.f32.mrb[0].mxu0
    %v378 = vadd.f32 %v307, %v377
    %v379 = vpop.f32.mrb[0].mxu0
    %v380 = vadd.f32 %v309, %v379
    %381 = vdwg.mxu0
    %382 = vmatprep.subr.mxu0 %v166
    %383 = vmatpush1.msra.mxu0 %v165
    %384 = vmatprep.subr.mxu0 %v168
    %385 = vmatpush1.msra.mxu0 %v167
    %386 = vmatprep.subr.mxu0 %v170
    %387 = vmatpush1.msra.mxu0 %v169
    %388 = vmatprep.subr.mxu0 %v172
    %389 = vmatpush1.msra.mxu0 %v171
    %390 = vmatprep.subr.mxu0 %v174
    %391 = vmatpush1.msra.mxu0 %v173
    %392 = vmatprep.subr.mxu0 %v176
    %393 = vmatpush1.msra.mxu0 %v175
    %394 = vmatprep.subr.mxu0 %v178
    %395 = vmatpush1.msra.mxu0 %v177
    %396 = vmatprep.subr.mxu0 %v180
    %397 = vmatpush1.msra.mxu0 %v179
    %398 = vmatprep.subr.mxu0 %v182
    %399 = vmatpush1.msra.mxu0 %v181
    %400 = vmatprep.subr.mxu0 %v184
    %401 = vmatpush1.msra.mxu0 %v183
    %402 = vmatprep.subr.mxu0 %v186
    %403 = vmatpush1.msra.mxu0 %v185
    %404 = vmatprep.subr.mxu0 %v188
    %405 = vmatpush1.msra.mxu0 %v187
    %406 = vmatprep.subr.mxu0 %v190
    %407 = vmatpush1.msra.mxu0 %v189
    %408 = vmatprep.subr.mxu0 %v192
    %409 = vmatpush1.msra.mxu0 %v191
    %410 = vmatprep.subr.mxu0 %v194
    %411 = vmatpush1.msra.mxu0 %v193
    %412 = vmatprep.subr.mxu0 %v196
    %413 = vmatpush1.msra.mxu0 %v195
    %414 = vmatprep.subr.mxu0 0.0
    %415 = vmatpush1.msra.mxu0 0.0
    %416 = vmatprep.subr.mxu0 0.0
    %417 = vmatpush1.msra.mxu0 0.0
    %418 = vmatprep.subr.mxu0 0.0
    %419 = vmatpush1.msra.mxu0 0.0
    %420 = vmatprep.subr.mxu0 0.0
    %421 = vmatpush1.msra.mxu0 0.0
    %422 = vmatprep.subr.mxu0 0.0
    %423 = vmatpush1.msra.mxu0 0.0
    %424 = vmatprep.subr.mxu0 0.0
    %425 = vmatpush1.msra.mxu0 0.0
    %426 = vmatprep.subr.mxu0 0.0
    %427 = vmatpush1.msra.mxu0 0.0
    %428 = vmatprep.subr.mxu0 0.0
    %429 = vmatpush1.msra.mxu0 0.0
    %430 = vmatprep.subr.mxu0 0.0
    %431 = vmatpush1.msra.mxu0 0.0
    %432 = vmatprep.subr.mxu0 0.0
    %433 = vmatpush1.msra.mxu0 0.0
    %434 = vmatprep.subr.mxu0 0.0
    %435 = vmatpush1.msra.mxu0 0.0
    %436 = vmatprep.subr.mxu0 0.0
    %437 = vmatpush1.msra.mxu0 0.0
    %438 = vmatprep.subr.mxu0 0.0
    %439 = vmatpush1.msra.mxu0 0.0
    %440 = vmatprep.subr.mxu0 0.0
    %441 = vmatpush1.msra.mxu0 0.0
    %442 = vmatprep.subr.mxu0 0.0
    %443 = vmatpush1.msra.mxu0 0.0
    %444 = vmatprep.subr.mxu0 0.0
    %445 = vmatpush1.msra.mxu0 0.0
    %446 = vmatprep.mubr.f32.mxu0 0.0
    %447 = vmatmul.mubr.f32.gmra.mrb[0].mxu0 %v234
    %v448 = vpop.f32.mrb[0].mxu0
    %v449 = vadd.f32 %v378, %v448
    %v450 = vpop.f32.mrb[0].mxu0
    %v451 = vadd.f32 %v380, %v450
    %452 = vdwg.mxu0
    %v453 = vmax.f32 %v449, 0.0
    %v454 = vmax.f32 %v451, 0.0
    %v455 = vld [vmem:[%s3] sm:$0xff]
    %v456 = vld [vmem:[%s3 + $0x8] sm:$0xff]
    %v457 = vld [vmem:[%s3 + $0x10] sm:$0xff]
    %v458 = vld [vmem:[%s3 + $0x18] sm:$0xff]
    %v459 = vld [vmem:[%s3 + $0x20] sm:$0xff]
    %v460 = vld [vmem:[%s3 + $0x28] sm:$0xff]
    %v461 = vld [vmem:[%s3 + $0x30] sm:$0xff]
    %v462 = vld [vmem:[%s3 + $0x38] sm:$0xff]
    %v463 = vld [vmem:[%s3 + $0x40] sm:$0xff]
    %v464 = vld [vmem:[%s3 + $0x48] sm:$0xff]
    %v465 = vld [vmem:[%s3 + $0x50] sm:$0xff]
    %v466 = vld [vmem:[%s3 + $0x58] sm:$0xff]
    %v467 = vld [vmem:[%s3 + $0x60] sm:$0xff]
    %v468 = vld [vmem:[%s3 + $0x68] sm:$0xff]
    %v469 = vld [vmem:[%s3 + $0x70] sm:$0xff]
    %v470 = vld [vmem:[%s3 + $0x78] sm:$0xff]
    %v471 = vld [vmem:[%s3 + $0x80] sm:$0xff]
    %v472 = vld [vmem:[%s3 + $0x88] sm:$0xff]
    %v473 = vld [vmem:[%s3 + $0x90] sm:$0xff]
    %v474 = vld [vmem:[%s3 + $0x98] sm:$0xff]
    %v475 = vld [vmem:[%s3 + $0xa0] sm:$0xff]
    %v476 = vld [vmem:[%s3 + $0xa8] sm:$0xff]
    %v477 = vld [vmem:[%s3 + $0xb0] sm:$0xff]
    %v478 = vld [vmem:[%s3 + $0xb8] sm:$0xff]
    %v479 = vld [vmem:[%s3 + $0xc0] sm:$0xff]
    %v480 = vld [vmem:[%s3 + $0xc8] sm:$0xff]
    %v481 = vld [vmem:[%s3 + $0xd0] sm:$0xff]
    %v482 = vld [vmem:[%s3 + $0xd8] sm:$0xff]
    %v483 = vld [vmem:[%s3 + $0xe0] sm:$0xff]
    %v484 = vld [vmem:[%s3 + $0xe8] sm:$0xff]
    %v485 = vld [vmem:[%s3 + $0xf0] sm:$0xff]
    %v486 = vld [vmem:[%s3 + $0xf8] sm:$0xff]
    %v487 = vld [vmem:[%s4] sm:$0x1]
    %v489 = vlaneseq
    %v490 = vshrl.u32 %v489, 7
    %v491 = vsub.s32 0, %v490
    %v492 = vrot.slane %v487, %v491
    %494 = vmatprep.subr.mxu0 0.0
    %495 = vmatpush1.msra.mxu0 %v455
    %496 = vmatprep.subr.mxu0 0.0
    %497 = vmatpush1.msra.mxu0 %v456
    %498 = vmatprep.subr.mxu0 0.0
    %499 = vmatpush1.msra.mxu0 %v457
    %500 = vmatprep.subr.mxu0 0.0
    %501 = vmatpush1.msra.mxu0 %v458
    %502 = vmatprep.subr.mxu0 0.0
    %503 = vmatpush1.msra.mxu0 %v459
    %504 = vmatprep.subr.mxu0 0.0
    %505 = vmatpush1.msra.mxu0 %v460
    %506 = vmatprep.subr.mxu0 0.0
    %507 = vmatpush1.msra.mxu0 %v461
    %508 = vmatprep.subr.mxu0 0.0
    %509 = vmatpush1.msra.mxu0 %v462
    %510 = vmatprep.subr.mxu0 0.0
    %511 = vmatpush1.msra.mxu0 %v463
    %512 = vmatprep.subr.mxu0 0.0
    %513 = vmatpush1.msra.mxu0 %v464
    %514 = vmatprep.subr.mxu0 0.0
    %515 = vmatpush1.msra.mxu0 %v465
    %516 = vmatprep.subr.mxu0 0.0
    %517 = vmatpush1.msra.mxu0 %v466
    %518 = vmatprep.subr.mxu0 0.0
    %519 = vmatpush1.msra.mxu0 %v467
    %520 = vmatprep.subr.mxu0 0.0
    %521 = vmatpush1.msra.mxu0 %v468
    %522 = vmatprep.subr.mxu0 0.0
    %523 = vmatpush1.msra.mxu0 %v469
    %524 = vmatprep.subr.mxu0 0.0
    %525 = vmatpush1.msra.mxu0 %v470
    %526 = vmatprep.subr.mxu0 0.0
    %527 = vmatpush1.msra.mxu0 %v471
    %528 = vmatprep.subr.mxu0 0.0
    %529 = vmatpush1.msra.mxu0 %v472
    %530 = vmatprep.subr.mxu0 0.0
    %531 = vmatpush1.msra.mxu0 %v473
    %532 = vmatprep.subr.mxu0 0.0
    %533 = vmatpush1.msra.mxu0 %v474
    %534 = vmatprep.subr.mxu0 0.0
    %535 = vmatpush1.msra.mxu0 %v475
    %536 = vmatprep.subr.mxu0 0.0
    %537 = vmatpush1.msra.mxu0 %v476
    %538 = vmatprep.subr.mxu0 0.0
    %539 = vmatpush1.msra.mxu0 %v477
    %540 = vmatprep.subr.mxu0 0.0
    %541 = vmatpush1.msra.mxu0 %v478
    %542 = vmatprep.subr.mxu0 0.0
    %543 = vmatpush1.msra.mxu0 %v479
    %544 = vmatprep.subr.mxu0 0.0
    %545 = vmatpush1.msra.mxu0 %v480
    %546 = vmatprep.subr.mxu0 0.0
    %547 = vmatpush1.msra.mxu0 %v481
    %548 = vmatprep.subr.mxu0 0.0
    %549 = vmatpush1.msra.mxu0 %v482
    %550 = vmatprep.subr.mxu0 0.0
    %551 = vmatpush1.msra.mxu0 %v483
    %552 = vmatprep.subr.mxu0 0.0
    %553 = vmatpush1.msra.mxu0 %v484
    %554 = vmatprep.subr.mxu0 0.0
    %555 = vmatpush1.msra.mxu0 %v485
    %556 = vmatprep.subr.mxu0 0.0
    %557 = vmatpush1.msra.mxu0 %v486
    %558 = vmatprep.mubr.f32.mxu0 %v454
    %559 = vmatmul.mubr.f32.gmra.mrb[0].mxu0 %v453
    %v560 = vpop.f32.mrb[0].mxu0
    %v561 = vadd.f32 %v492, %v560
    %v562 = vpop.f32.mrb[0].mxu0
    %563 = vdwg.mxu0
    %vm564 = vcmask 9216
    %v565 = vsel %vm564, %v561, -inf
    %566 = vmax.xlane.f32.xlu0 %v565
    %v567 = vpop.xlane.xlu0 %566
    %v568 = vsub.f32 %v561, %v567
    %v569 = vmul.f32 %v568, 1.442695
    %v570 = vpow.pop %v569
    %v571 = vsel %vm564, %v570, 0.0
    %572 = vadd.xlane.f32.xlu0 %v571
    %v573 = vpop.xlane.xlu0 %572
    %v574 = vrcp.pop %v573
    %v575 = vmul.f32 %v570, %v574
    %576 = vst.msk [vmem:[#allocation5] sm:$0x3] %vm564, %v575
    // Predicated region
    $region26: #{tpu_custom_call.1} parent=1 // pred_check
      _
    $region27: #{tpu_custom_call.1} parent=1 // pred_check_branch
      %578 = sbr.rel (0) target = $region29
    $region28: #{tpu_custom_call.1} parent=1 // pred_region
      %s580 = ssub.s32 32, 32
      %581 = vsyncadd [#allocation4], %s580
      %s583 = sshll.u32 [#allocation5], 4
      %s584 = int_to_ptr.vmem [resolvable:$true] %s583
      %586 = dma.vmem_to_hbm [thread:$0]  %s584, 32, %s5, [#allocation4]
    $region29: #{tpu_custom_call.1} parent=1 // pred_fallthru
      _
    // Predicated region
    $region30: #{tpu_custom_call.1} parent=1 // pred_check
      _
    $region31: #{tpu_custom_call.1} parent=1 // pred_check_branch
      %588 = sbr.rel (0) target = $region33
    $region32: #{tpu_custom_call.1} parent=1 // pred_region
      %589 = dma.done [#allocation4], 32
    $region33: #{tpu_custom_call.1} parent=1 // pred_fallthru
      _
    %590 = vsyncpa [#allocation3], 1
    %591 = vsyncpa [#allocation4], 1

</llo_original>
